<compile_context>
chip_gen: v7x
topology: tpu7x:2x2x1
jax: 0.10.0
libtpu: 0.0.40
codegen_flags: <defaults>
</compile_context>

<pallas_src>
import jax
import jax.numpy as jnp
from jax.experimental import pallas as pl
from jax.experimental.pallas import tpu as pltpu

_LANE = 128
_SUBLANE = 8


def _round_up(x, m):
    return (x + m - 1) // m * m


def mlp_kernel(x_ref, w_ref, b_ref, o_ref):
    # x_ref: (tm, K)   bf16 row tile of the input features
    # w_ref: (K, tn)   bf16 pre-transposed weight stripe (standard MXU layout)
    # b_ref: (1, tn)   f32 bias stripe (zero-padded)
    # o_ref: (tm, tn)  output tile (tn % 128 == 0 -> lane-dense stores)
    y = jnp.dot(x_ref[...], w_ref[...], preferred_element_type=jnp.float32)
    y = y + b_ref[...]
    o_ref[...] = jnp.tanh(y).astype(o_ref.dtype)


def prepare_mlp_params(weight, bias, compute_dtype=jnp.bfloat16):
    """One-time parameter prep (hoisted out of the per-call path): cast to the
    MXU compute dtype, zero-pad out_features to a lane multiple, and
    pre-transpose to (K, Np)."""
    N, K = weight.shape
    Np = _round_up(N, _LANE)
    w = weight.astype(compute_dtype)
    b = bias.astype(jnp.float32)
    if Np != N:
        w = jnp.pad(w, ((0, Np - N), (0, 0)))
        b = jnp.pad(b, (0, Np - N))
    w_t = jnp.transpose(w)          # (K, Np), materialized once in HBM
    return w_t, b.reshape(1, Np), N


def _vmem_plan(M, K, Np, cd, od, phys_vmem):
    """Pick (tm, tn, vmem_limit) from an honest VMEM estimate."""
    usable = int(phys_vmem * 0.85)
    scratch = 2 << 20                                   # compiler internal scratch
    # Resident weight?  Count 2 buffers conservatively (the kernel asks for
    # Buffered(1) but we stay safe if that request is ignored / rejected).
    w_fixed = 2 * (Np * K * cd + Np * 4)
    if w_fixed <= int(usable * 0.6):
        tn = Np
        fixed = w_fixed + scratch
    else:
        tn = min(512, Np)
        fixed = 2 * (tn * K * cd + tn * 4) + scratch    # double-buffered stripes
    # per-row bytes: 2x x-tile, 2x out-tile, f32 matmul/tanh intermediate
    per_row = 2 * K * cd + 2 * tn * od + tn * 4
    budget = usable - fixed
    if budget > per_row * _SUBLANE:
        rows_cap = max(_SUBLANE, (budget // per_row) // _SUBLANE * _SUBLANE)
    else:
        rows_cap = _SUBLANE
    tm = min(512, rows_cap)
    if M <= tm:
        # Split so the "parallel" axis has >=2 steps for v7x's 2 TensorCores;
        # tiny batches stay as one full-extent tile.
        tm = _round_up(pl.cdiv(M, 2), _SUBLANE) if M >= 32 else M
    needed = fixed + tm * per_row
    # Always explicit: >= 32 MiB (v5e default scoped is only 16 MiB), below physical.
    limit = int(min(max(needed * 1.25, 32 << 20), phys_vmem * 0.9))
    return tm, tn, limit


def mlp_layer(features, params, *, compute_dtype=jnp.bfloat16):
    """Pallas MLPLayer.forward: tanh(features @ W.T + b), params from prepare_mlp_params."""
    w_t, b2, n_out = params
    M, K = features.shape
    Kw, Np = w_t.shape
    assert K == Kw, "weight in_features must match feature dim"
    out_dtype = features.dtype

    x = features.astype(compute_dtype)

    try:
        phys_vmem = int(pltpu.get_tpu_info().vmem_capacity_bytes)
    except Exception:
        phys_vmem = 64 << 20                     # conservative (v7x per-TC)

    cd = jnp.dtype(compute_dtype).itemsize
    od = jnp.dtype(out_dtype).itemsize
    tm, tn, vmem_limit = _vmem_plan(M, K, Np, cd, od, phys_vmem)
    resident = (tn == Np)

    def _call(single_buffer_invariants):
        if resident:
            grid = (pl.cdiv(M, tm),)
            dims = ("parallel",)
            if single_buffer_invariants:
                w_spec = pl.BlockSpec((K, Np), lambda i: (0, 0),
                                      pipeline_mode=pl.Buffered(1))
                b_spec = pl.BlockSpec((1, Np), lambda i: (0, 0),
                                      pipeline_mode=pl.Buffered(1))
            else:
                w_spec = pl.BlockSpec((K, Np), lambda i: (0, 0))
                b_spec = pl.BlockSpec((1, Np), lambda i: (0, 0))
            in_specs = [pl.BlockSpec((tm, K), lambda i: (i, 0)), w_spec, b_spec]
            out_specs = pl.BlockSpec((tm, Np), lambda i: (i, 0))
        else:
            grid = (pl.cdiv(M, tm), pl.cdiv(Np, tn))
            dims = ("parallel", "parallel")
            in_specs = [pl.BlockSpec((tm, K), lambda i, j: (i, 0)),
                        pl.BlockSpec((K, tn), lambda i, j: (0, j)),
                        pl.BlockSpec((1, tn), lambda i, j: (0, j))]
            out_specs = pl.BlockSpec((tm, tn), lambda i, j: (i, j))
        return pl.pallas_call(
            mlp_kernel,
            out_shape=jax.ShapeDtypeStruct((M, Np), out_dtype),
            grid_spec=pltpu.PrefetchScalarGridSpec(
                num_scalar_prefetch=0,
                grid=grid,
                in_specs=in_specs,
                out_specs=out_specs,
            ),
            compiler_params=pltpu.CompilerParams(
                dimension_semantics=dims,
                vmem_limit_bytes=vmem_limit),
        )(x, w_t, b2)

    if resident:
        try:
            out_padded = _call(True)
        except Exception:
            # pipeline_mode / Buffered(1) not accepted on this build: fall back
            # to default double-buffering (VMEM plan already accounts for it).
            out_padded = _call(False)
    else:
        out_padded = _call(False)

    return out_padded[:, :n_out] if Np != n_out else out_padded


def init_linear_params(key, in_features, out_features, dtype=jnp.float32):
    """Deterministic init mimicking nn.Linear (uniform +/- 1/sqrt(in_features))."""
    kw, kb = jax.random.split(key)
    bound = 1.0 / (in_features ** 0.5)
    weight = jax.random.uniform(
        kw, (out_features, in_features), dtype=dtype, minval=-bound, maxval=bound)
    bias = jax.random.uniform(
        kb, (out_features,), dtype=dtype, minval=-bound, maxval=bound)
    return weight, bias


if __name__ == "__main__":
    # config.hidden_size = 32, scale = 1  ->  Linear(32, 32); batch of 8 CLS vectors
    hidden_size = 32
    scale = 1
    batch = 8
    dim = hidden_size * scale

    key = jax.random.PRNGKey(0)
    k_x, k_p = jax.random.split(key)

    features = jax.random.normal(k_x, (batch, dim), dtype=jnp.float32)
    weight, bias = init_linear_params(k_p, dim, dim, dtype=jnp.float32)

    params = prepare_mlp_params(weight, bias)          # one-time prep (cast/pad/transpose)
    params = jax.block_until_ready(params)

    out = mlp_layer(features, params)
    out = jax.block_until_ready(out)

    # Reference with the same bf16 operand cast / f32 accumulation as the kernel.
    xb = features.astype(jnp.bfloat16).astype(jnp.float32)
    wb = weight.astype(jnp.bfloat16).astype(jnp.float32)
    ref = jnp.tanh(xb @ wb.T + bias)

    assert out.shape == (batch, dim)
    assert out.dtype == features.dtype
    assert jnp.allclose(out, ref, atol=2e-2, rtol=2e-2), "mismatch vs reference"

    print("KERNEL_OK")
</pallas_src>

<mosaic_0001>
module attributes {stable_mosaic.version = 11 : i64} {
  func.func @mlp_kernel(%arg0: i32, %arg1: memref<8x32xbf16, #tpu.memory_space<vmem>>, %arg2: memref<32x128xbf16, #tpu.memory_space<vmem>>, %arg3: memref<1x128xf32, #tpu.memory_space<vmem>>, %arg4: memref<8x128xf32, #tpu.memory_space<vmem>>) attributes {dimension_semantics = [#tpu.dimension_semantics<parallel>], iteration_bounds = array<i64: 1>, scalar_prefetch = 0 : i64, scratch_operands = 0 : i64, tpu.core_type = #tpu.core_type<tc>, window_params = [{transform_indices = @transform_0, window_bounds = array<i64: 8, 32>}, {pipeline_mode = #tpu.pipeline_mode<synchronous>, transform_indices = @transform_1, window_bounds = array<i64: 32, 128>}, {pipeline_mode = #tpu.pipeline_mode<synchronous>, transform_indices = @transform_2, window_bounds = array<i64: 1, 128>}, {transform_indices = @transform_3, window_bounds = array<i64: 8, 128>}]} {
    %c0 = arith.constant 0 : index
    %c0_0 = arith.constant 0 : index
    %0 = vector.load %arg1[%c0, %c0_0] : memref<8x32xbf16, #tpu.memory_space<vmem>>, vector<8x32xbf16>
    %c0_1 = arith.constant 0 : index
    %c0_2 = arith.constant 0 : index
    %1 = vector.load %arg2[%c0_1, %c0_2] : memref<32x128xbf16, #tpu.memory_space<vmem>>, vector<32x128xbf16>
    %cst = arith.constant dense<0.000000e+00> : vector<8x128xf32>
    %2 = tpu.matmul %0, %1, %cst {dimension_numbers = #tpu.dot_dimension_numbers<[1], [0], [0], [1], [0, 0, 1, 1], [], []>} : vector<8x32xbf16>, vector<32x128xbf16>, vector<8x128xf32> -> vector<8x128xf32>
    %c0_3 = arith.constant 0 : index
    %c0_4 = arith.constant 0 : index
    %3 = vector.load %arg3[%c0_3, %c0_4] : memref<1x128xf32, #tpu.memory_space<vmem>>, vector<1x128xf32>
    %4 = vector.broadcast %3 : vector<1x128xf32> to vector<8x128xf32>
    %5 = arith.addf %2, %4 : vector<8x128xf32>
    %6 = math.tanh %5 : vector<8x128xf32>
    %c0_5 = arith.constant 0 : index
    %c0_6 = arith.constant 0 : index
    %7 = vector.load %arg4[%c0_5, %c0_6] : memref<8x128xf32, #tpu.memory_space<vmem>>, vector<8x128xf32>
    tpu.vector_store %arg4[%c0_5, %c0_6], %6 {strides = array<i32>} : memref<8x128xf32, #tpu.memory_space<vmem>>, vector<8x128xf32>,
    return
  }
  func.func @transform_0(%arg0: i32) -> (i32, i32) {
    %c0_i32 = arith.constant 0 : i32
    %c0_i32_0 = arith.constant 0 : i32
    return %arg0, %c0_i32 : i32, i32
  }
  func.func @transform_1(%arg0: i32) -> (i32, i32) {
    %c0_i32 = arith.constant 0 : i32
    %c0_i32_0 = arith.constant 0 : i32
    %c0_i32_1 = arith.constant 0 : i32
    return %c0_i32, %c0_i32_0 : i32, i32
  }
  func.func @transform_2(%arg0: i32) -> (i32, i32) {
    %c0_i32 = arith.constant 0 : i32
    %c0_i32_0 = arith.constant 0 : i32
    %c0_i32_1 = arith.constant 0 : i32
    return %c0_i32, %c0_i32_0 : i32, i32
  }
  func.func @transform_3(%arg0: i32) -> (i32, i32) {
    %c0_i32 = arith.constant 0 : i32
    %c0_i32_0 = arith.constant 0 : i32
    return %arg0, %c0_i32 : i32, i32
  }
}

module attributes {stable_mosaic.version = 11 : i64} {
  func.func @mlp_kernel(%arg0: i32, %arg1: memref<8x32xbf16, #tpu.memory_space<vmem>>, %arg2: memref<32x128xbf16, #tpu.memory_space<vmem>>, %arg3: memref<1x128xf32, #tpu.memory_space<vmem>>, %arg4: memref<8x128xf32, #tpu.memory_space<vmem>>) attributes {dimension_semantics = [#tpu.dimension_semantics<parallel>], iteration_bounds = array<i64: 1>, scalar_prefetch = 0 : i64, scratch_operands = 0 : i64, tpu.core_type = #tpu.core_type<tc>, window_params = [{transform_indices = @transform_0, window_bounds = array<i64: 8, 32>}, {pipeline_mode = #tpu.pipeline_mode<synchronous>, transform_indices = @transform_1, window_bounds = array<i64: 32, 128>}, {pipeline_mode = #tpu.pipeline_mode<synchronous>, transform_indices = @transform_2, window_bounds = array<i64: 1, 128>}, {transform_indices = @transform_3, window_bounds = array<i64: 8, 128>}]} {
    %c0 = arith.constant 0 : index
    %c0_0 = arith.constant 0 : index
    %0 = vector.load %arg1[%c0, %c0_0] : memref<8x32xbf16, #tpu.memory_space<vmem>>, vector<8x32xbf16>
    %c0_1 = arith.constant 0 : index
    %c0_2 = arith.constant 0 : index
    %1 = vector.load %arg2[%c0_1, %c0_2] : memref<32x128xbf16, #tpu.memory_space<vmem>>, vector<32x128xbf16>
    %cst = arith.constant dense<0.000000e+00> : vector<8x128xf32>
    %2 = tpu.matmul %0, %1, %cst {dimension_numbers = #tpu.dot_dimension_numbers<[1], [0], [0], [1], [0, 0, 1, 1], [], []>} : vector<8x32xbf16>, vector<32x128xbf16>, vector<8x128xf32> -> vector<8x128xf32>
    %c0_3 = arith.constant 0 : index
    %c0_4 = arith.constant 0 : index
    %3 = vector.load %arg3[%c0_3, %c0_4] : memref<1x128xf32, #tpu.memory_space<vmem>>, vector<1x128xf32>
    %4 = vector.broadcast %3 : vector<1x128xf32> to vector<8x128xf32>
    %5 = arith.addf %2, %4 : vector<8x128xf32>
    %6 = math.tanh %5 : vector<8x128xf32>
    %c0_5 = arith.constant 0 : index
    %c0_6 = arith.constant 0 : index
    %7 = vector.load %arg4[%c0_5, %c0_6] : memref<8x128xf32, #tpu.memory_space<vmem>>, vector<8x128xf32>
    tpu.vector_store %arg4[%c0_5, %c0_6], %6 {strides = array<i32>} : memref<8x128xf32, #tpu.memory_space<vmem>>, vector<8x128xf32>,
    return
  }
  func.func @transform_0(%arg0: i32) -> (i32, i32) {
    %c0_i32 = arith.constant 0 : i32
    %c0_i32_0 = arith.constant 0 : i32
    return %arg0, %c0_i32 : i32, i32
  }
  func.func @transform_1(%arg0: i32) -> (i32, i32) {
    %c0_i32 = arith.constant 0 : i32
    %c0_i32_0 = arith.constant 0 : i32
    %c0_i32_1 = arith.constant 0 : i32
    return %c0_i32, %c0_i32_0 : i32, i32
  }
  func.func @transform_2(%arg0: i32) -> (i32, i32) {
    %c0_i32 = arith.constant 0 : i32
    %c0_i32_0 = arith.constant 0 : i32
    %c0_i32_1 = arith.constant 0 : i32
    return %c0_i32, %c0_i32_0 : i32, i32
  }
  func.func @transform_3(%arg0: i32) -> (i32, i32) {
    %c0_i32 = arith.constant 0 : i32
    %c0_i32_0 = arith.constant 0 : i32
    return %arg0, %c0_i32 : i32, i32
  }
}

</mosaic_0001>

<llo_original>
// kernel: tpu_custom_call.1
$region0: #{tpu_custom_call.1}
  #allocation0 [shape = 'u32[]', space=smem, size = 0x4, offset = 0x4, fixed_abs, tag = 'smem constant byte address 0x4 - core index']
  #allocation1 [shape = 'u32[144,128]{1,0:T(1,128)}', space=vmem, size = 0x12000, scoped, tag = 'internal scratch']
  %s0 = inlined_call_operand.hbm [shape: bf16[8,32], index: 0, kind: input, shape index: {}]
  %s1 = inlined_call_operand.hbm [shape: bf16[32,128], index: 1, kind: input, shape index: {}]
  %s2 = inlined_call_operand.vmem [shape: f32[1,128], index: 2, kind: input, shape index: {}]
  %s3 = inlined_call_operand.hbm [shape: f32[8,128], index: 3, kind: output, shape index: {}]
  %s4 = sld [smem:[#allocation0]]
  $region30: #{tpu_custom_call.1} parent=0
    _
  %s6 = ssub.s32 1, %s4
  %s7 = scalar_select 0, %s6, %s4
  $region1: #{tpu_custom_call.1} parent=0
    #allocation2 [shape = 'u8[2048]{0}', space=vmem, size = 0x800, scoped, tag = 'input window, operand 0, single buffered']
    #allocation3 [shape = 's32[1]{0}', space=sflag, size = 0x4, scoped, tag = 'scoped memory for tpu_custom_call.1']
    #allocation4 [shape = 's32[1]{0}', space=sflag, size = 0x4, scoped, tag = 'scoped memory for tpu_custom_call.1']
    #allocation5 [shape = 'u8[8192]{0}', space=vmem, size = 0x2000, scoped, tag = 'input window, operand 1, single buffered']
    #allocation6 [shape = 's32[1]{0}', space=sflag, size = 0x4, scoped, tag = 'scoped memory for tpu_custom_call.1']
    #allocation7 [shape = 'u8[4096]{0}', space=vmem, size = 0x1000, scoped, tag = 'output window, operand 0, single buffered']
    %8 = vsyncpa [#allocation3], 0
    %9 = vsyncpa [#allocation6], 0
    %10 = vsyncpa [#allocation4], 0
    // Predicated region
    $region2: #{tpu_custom_call.1} parent=1 // pred_check
      _
    $region3: #{tpu_custom_call.1} parent=1 // pred_check_branch
      %12 = sbr.rel (0) target = $region5
    $region4: #{tpu_custom_call.1} parent=1 // pred_region
      %s14 = ssub.s32 64, 64
      %15 = vsyncadd [#allocation3], %s14
      %s17 = sshll.u32 [#allocation2], 4
      %s18 = int_to_ptr.vmem [resolvable:$true] %s17
      %20 = dma.hbm_to_vmem [thread:$0]  %s0, 64, %s18, [#allocation3]
    $region5: #{tpu_custom_call.1} parent=1 // pred_fallthru
      _
    // Predicated region
    $region6: #{tpu_custom_call.1} parent=1 // pred_check
      _
    $region7: #{tpu_custom_call.1} parent=1 // pred_check_branch
      %22 = sbr.rel (0) target = $region9
    $region8: #{tpu_custom_call.1} parent=1 // pred_region
      %s24 = ssub.s32 256, 256
      %25 = vsyncadd [#allocation6], %s24
      %s26 = sshll.u32 [#allocation5], 4
      %s27 = int_to_ptr.vmem [resolvable:$true] %s26
      %32 = dma.hbm_to_vmem [thread:$0]  %s1, 256, %s27, [#allocation6], 64, 64, 4
    $region9: #{tpu_custom_call.1} parent=1 // pred_fallthru
      _
    // Predicated region
    $region10: #{tpu_custom_call.1} parent=1 // pred_check
      _
    $region11: #{tpu_custom_call.1} parent=1 // pred_check_branch
      %34 = sbr.rel (0) target = $region13
    $region12: #{tpu_custom_call.1} parent=1 // pred_region
      _
    $region13: #{tpu_custom_call.1} parent=1 // pred_fallthru
      _
    // Predicated region
    $region14: #{tpu_custom_call.1} parent=1 // pred_check
      _
    $region15: #{tpu_custom_call.1} parent=1 // pred_check_branch
      %36 = sbr.rel (0) target = $region17
    $region16: #{tpu_custom_call.1} parent=1 // pred_region
      %37 = dma.done [#allocation3], 64
    $region17: #{tpu_custom_call.1} parent=1 // pred_fallthru
      _
    // Predicated region
    $region18: #{tpu_custom_call.1} parent=1 // pred_check
      _
    $region19: #{tpu_custom_call.1} parent=1 // pred_check_branch
      %39 = sbr.rel (0) target = $region21
    $region20: #{tpu_custom_call.1} parent=1 // pred_region
      %40 = dma.done [#allocation6], 256
    $region21: #{tpu_custom_call.1} parent=1 // pred_fallthru
      _
    %v42 = vld [vmem:[#allocation2] sm:$0xf]
    %v43 = vld [vmem:[#allocation5] sm:$0xf]
    %v44 = vld [vmem:[#allocation5 + $0x4] sm:$0xf]
    %v45 = vld [vmem:[#allocation5 + $0x8] sm:$0xf]
    %v46 = vld [vmem:[#allocation5 + $0xc] sm:$0xf]
    %v47 = vld [vmem:[%s2] sm:$0x1]
    %v49 = vlaneseq
    %v50 = vshrl.u32 %v49, 7
    %v51 = vsub.s32 0, %v50
    %v52 = vrot.slane %v47, %v51
    %v58 = vunpack.c.l.b16 %v43
    %v59 = vunpack.c.l.b16 %v44
    %v60 = vunpack.c.l.b16 %v45
    %v61 = vunpack.c.l.b16 %v46
    %v62 = vpack.c.b16 %v59, %v58
    %v63 = vpack.c.b16 %v61, %v60
    %vm66 = vcmask 261120
    %v68 = vsel %vm66, %v42, 0
    %70 = vmatprep.subr.bf16.mxu0 0
    %71 = vmatpush1.bf16.msra.mxu0 %v62
    %72 = vmatprep.subr.bf16.mxu0 0
    %73 = vmatpush1.bf16.msra.mxu0 %v63
    %74 = vmatprep.subr.bf16.mxu0 0
    %75 = vmatpush1.bf16.msra.mxu0 0
    %76 = vmatprep.subr.bf16.mxu0 0
    %77 = vmatpush1.bf16.msra.mxu0 0
    %78 = vmatprep.subr.bf16.mxu0 0
    %79 = vmatpush1.bf16.msra.mxu0 0
    %80 = vmatprep.subr.bf16.mxu0 0
    %81 = vmatpush1.bf16.msra.mxu0 0
    %82 = vmatprep.subr.bf16.mxu0 0
    %83 = vmatpush1.bf16.msra.mxu0 0
    %84 = vmatprep.subr.bf16.mxu0 0
    %85 = vmatpush1.bf16.msra.mxu0 0
    %86 = vmatprep.subr.bf16.mxu0 0
    %87 = vmatpush1.bf16.msra.mxu0 0
    %88 = vmatprep.subr.bf16.mxu0 0
    %89 = vmatpush1.bf16.msra.mxu0 0
    %90 = vmatprep.subr.bf16.mxu0 0
    %91 = vmatpush1.bf16.msra.mxu0 0
    %92 = vmatprep.subr.bf16.mxu0 0
    %93 = vmatpush1.bf16.msra.mxu0 0
    %94 = vmatprep.subr.bf16.mxu0 0
    %95 = vmatpush1.bf16.msra.mxu0 0
    %96 = vmatprep.subr.bf16.mxu0 0
    %97 = vmatpush1.bf16.msra.mxu0 0
    %98 = vmatprep.subr.bf16.mxu0 0
    %99 = vmatpush1.bf16.msra.mxu0 0
    %100 = vmatprep.subr.bf16.mxu0 0
    %101 = vmatpush1.bf16.msra.mxu0 0
    %102 = vmatprep.mubr.bf16.mxu0 0
    %103 = vmatmul.mubr.bf16.gmra.mrb[0].mxu0 %v68
    %v104 = vpop.f32.mrb[0].mxu0
    %v105 = vadd.f32 %v52, %v104
    %v106 = vpop.f32.mrb[0].mxu0
    %v107 = vpop.f32.mrb[0].mxu0
    %v108 = vpop.f32.mrb[0].mxu0
    %109 = vdwg.mxu0
    %v110 = vtanh.pop %v105
    %111 = vst [vmem:[#allocation7] sm:$0xff] %v110
    // Predicated region
    $region22: #{tpu_custom_call.1} parent=1 // pred_check
      _
    $region23: #{tpu_custom_call.1} parent=1 // pred_check_branch
      %113 = sbr.rel (0) target = $region25
    $region24: #{tpu_custom_call.1} parent=1 // pred_region
      %s115 = ssub.s32 128, 128
      %116 = vsyncadd [#allocation4], %s115
      %s118 = sshll.u32 [#allocation7], 4
      %s119 = int_to_ptr.vmem [resolvable:$true] %s118
      %121 = dma.vmem_to_hbm [thread:$0]  %s119, 128, %s3, [#allocation4]
    $region25: #{tpu_custom_call.1} parent=1 // pred_fallthru
      _
    // Predicated region
    $region26: #{tpu_custom_call.1} parent=1 // pred_check
      _
    $region27: #{tpu_custom_call.1} parent=1 // pred_check_branch
      %123 = sbr.rel (0) target = $region29
    $region28: #{tpu_custom_call.1} parent=1 // pred_region
      %124 = dma.done [#allocation4], 128
    $region29: #{tpu_custom_call.1} parent=1 // pred_fallthru
      _
    %125 = vsyncpa [#allocation3], 1
    %126 = vsyncpa [#allocation6], 1
    %127 = vsyncpa [#allocation4], 1

// kernel: tpu_custom_call.1
$region0: #{tpu_custom_call.1}
  #allocation0 [shape = 'u32[]', space=smem, size = 0x4, offset = 0x4, fixed_abs, tag = 'smem constant byte address 0x4 - core index']
  #allocation1 [shape = 'u32[144,128]{1,0:T(1,128)}', space=vmem, size = 0x12000, scoped, tag = 'internal scratch']
  %s0 = inlined_call_operand.hbm [shape: bf16[8,32], index: 0, kind: input, shape index: {}]
  %s1 = inlined_call_operand.hbm [shape: bf16[32,128], index: 1, kind: input, shape index: {}]
  %s2 = inlined_call_operand.vmem [shape: f32[1,128], index: 2, kind: input, shape index: {}]
  %s3 = inlined_call_operand.hbm [shape: f32[8,128], index: 3, kind: output, shape index: {}]
  %s4 = sld [smem:[#allocation0]]
  $region30: #{tpu_custom_call.1} parent=0
    _
  %s6 = ssub.s32 1, %s4
  %s7 = scalar_select 0, %s6, %s4
  $region1: #{tpu_custom_call.1} parent=0
    #allocation2 [shape = 'u8[2048]{0}', space=vmem, size = 0x800, scoped, tag = 'input window, operand 0, single buffered']
    #allocation3 [shape = 's32[1]{0}', space=sflag, size = 0x4, scoped, tag = 'scoped memory for tpu_custom_call.1']
    #allocation4 [shape = 's32[1]{0}', space=sflag, size = 0x4, scoped, tag = 'scoped memory for tpu_custom_call.1']
    #allocation5 [shape = 'u8[8192]{0}', space=vmem, size = 0x2000, scoped, tag = 'input window, operand 1, single buffered']
    #allocation6 [shape = 's32[1]{0}', space=sflag, size = 0x4, scoped, tag = 'scoped memory for tpu_custom_call.1']
    #allocation7 [shape = 'u8[4096]{0}', space=vmem, size = 0x1000, scoped, tag = 'output window, operand 0, single buffered']
    %8 = vsyncpa [#allocation3], 0
    %9 = vsyncpa [#allocation6], 0
    %10 = vsyncpa [#allocation4], 0
    // Predicated region
    $region2: #{tpu_custom_call.1} parent=1 // pred_check
      _
    $region3: #{tpu_custom_call.1} parent=1 // pred_check_branch
      %12 = sbr.rel (0) target = $region5
    $region4: #{tpu_custom_call.1} parent=1 // pred_region
      %s14 = ssub.s32 64, 64
      %15 = vsyncadd [#allocation3], %s14
      %s17 = sshll.u32 [#allocation2], 4
      %s18 = int_to_ptr.vmem [resolvable:$true] %s17
      %20 = dma.hbm_to_vmem [thread:$0]  %s0, 64, %s18, [#allocation3]
    $region5: #{tpu_custom_call.1} parent=1 // pred_fallthru
      _
    // Predicated region
    $region6: #{tpu_custom_call.1} parent=1 // pred_check
      _
    $region7: #{tpu_custom_call.1} parent=1 // pred_check_branch
      %22 = sbr.rel (0) target = $region9
    $region8: #{tpu_custom_call.1} parent=1 // pred_region
      %s24 = ssub.s32 256, 256
      %25 = vsyncadd [#allocation6], %s24
      %s26 = sshll.u32 [#allocation5], 4
      %s27 = int_to_ptr.vmem [resolvable:$true] %s26
      %32 = dma.hbm_to_vmem [thread:$0]  %s1, 256, %s27, [#allocation6], 64, 64, 4
    $region9: #{tpu_custom_call.1} parent=1 // pred_fallthru
      _
    // Predicated region
    $region10: #{tpu_custom_call.1} parent=1 // pred_check
      _
    $region11: #{tpu_custom_call.1} parent=1 // pred_check_branch
      %34 = sbr.rel (0) target = $region13
    $region12: #{tpu_custom_call.1} parent=1 // pred_region
      _
    $region13: #{tpu_custom_call.1} parent=1 // pred_fallthru
      _
    // Predicated region
    $region14: #{tpu_custom_call.1} parent=1 // pred_check
      _
    $region15: #{tpu_custom_call.1} parent=1 // pred_check_branch
      %36 = sbr.rel (0) target = $region17
    $region16: #{tpu_custom_call.1} parent=1 // pred_region
      %37 = dma.done [#allocation3], 64
    $region17: #{tpu_custom_call.1} parent=1 // pred_fallthru
      _
    // Predicated region
    $region18: #{tpu_custom_call.1} parent=1 // pred_check
      _
    $region19: #{tpu_custom_call.1} parent=1 // pred_check_branch
      %39 = sbr.rel (0) target = $region21
    $region20: #{tpu_custom_call.1} parent=1 // pred_region
      %40 = dma.done [#allocation6], 256
    $region21: #{tpu_custom_call.1} parent=1 // pred_fallthru
      _
    %v42 = vld [vmem:[#allocation2] sm:$0xf]
    %v43 = vld [vmem:[#allocation5] sm:$0xf]
    %v44 = vld [vmem:[#allocation5 + $0x4] sm:$0xf]
    %v45 = vld [vmem:[#allocation5 + $0x8] sm:$0xf]
    %v46 = vld [vmem:[#allocation5 + $0xc] sm:$0xf]
    %v47 = vld [vmem:[%s2] sm:$0x1]
    %v49 = vlaneseq
    %v50 = vshrl.u32 %v49, 7
    %v51 = vsub.s32 0, %v50
    %v52 = vrot.slane %v47, %v51
    %v58 = vunpack.c.l.b16 %v43
    %v59 = vunpack.c.l.b16 %v44
    %v60 = vunpack.c.l.b16 %v45
    %v61 = vunpack.c.l.b16 %v46
    %v62 = vpack.c.b16 %v59, %v58
    %v63 = vpack.c.b16 %v61, %v60
    %vm66 = vcmask 261120
    %v68 = vsel %vm66, %v42, 0
    %70 = vmatprep.subr.bf16.mxu0 0
    %71 = vmatpush1.bf16.msra.mxu0 %v62
    %72 = vmatprep.subr.bf16.mxu0 0
    %73 = vmatpush1.bf16.msra.mxu0 %v63
    %74 = vmatprep.subr.bf16.mxu0 0
    %75 = vmatpush1.bf16.msra.mxu0 0
    %76 = vmatprep.subr.bf16.mxu0 0
    %77 = vmatpush1.bf16.msra.mxu0 0
    %78 = vmatprep.subr.bf16.mxu0 0
    %79 = vmatpush1.bf16.msra.mxu0 0
    %80 = vmatprep.subr.bf16.mxu0 0
    %81 = vmatpush1.bf16.msra.mxu0 0
    %82 = vmatprep.subr.bf16.mxu0 0
    %83 = vmatpush1.bf16.msra.mxu0 0
    %84 = vmatprep.subr.bf16.mxu0 0
    %85 = vmatpush1.bf16.msra.mxu0 0
    %86 = vmatprep.subr.bf16.mxu0 0
    %87 = vmatpush1.bf16.msra.mxu0 0
    %88 = vmatprep.subr.bf16.mxu0 0
    %89 = vmatpush1.bf16.msra.mxu0 0
    %90 = vmatprep.subr.bf16.mxu0 0
    %91 = vmatpush1.bf16.msra.mxu0 0
    %92 = vmatprep.subr.bf16.mxu0 0
    %93 = vmatpush1.bf16.msra.mxu0 0
    %94 = vmatprep.subr.bf16.mxu0 0
    %95 = vmatpush1.bf16.msra.mxu0 0
    %96 = vmatprep.subr.bf16.mxu0 0
    %97 = vmatpush1.bf16.msra.mxu0 0
    %98 = vmatprep.subr.bf16.mxu0 0
    %99 = vmatpush1.bf16.msra.mxu0 0
    %100 = vmatprep.subr.bf16.mxu0 0
    %101 = vmatpush1.bf16.msra.mxu0 0
    %102 = vmatprep.mubr.bf16.mxu0 0
    %103 = vmatmul.mubr.bf16.gmra.mrb[0].mxu0 %v68
    %v104 = vpop.f32.mrb[0].mxu0
    %v105 = vadd.f32 %v52, %v104
    %v106 = vpop.f32.mrb[0].mxu0
    %v107 = vpop.f32.mrb[0].mxu0
    %v108 = vpop.f32.mrb[0].mxu0
    %109 = vdwg.mxu0
    %v110 = vtanh.pop %v105
    %111 = vst [vmem:[#allocation7] sm:$0xff] %v110
    // Predicated region
    $region22: #{tpu_custom_call.1} parent=1 // pred_check
      _
    $region23: #{tpu_custom_call.1} parent=1 // pred_check_branch
      %113 = sbr.rel (0) target = $region25
    $region24: #{tpu_custom_call.1} parent=1 // pred_region
      %s115 = ssub.s32 128, 128
      %116 = vsyncadd [#allocation4], %s115
      %s118 = sshll.u32 [#allocation7], 4
      %s119 = int_to_ptr.vmem [resolvable:$true] %s118
      %121 = dma.vmem_to_hbm [thread:$0]  %s119, 128, %s3, [#allocation4]
    $region25: #{tpu_custom_call.1} parent=1 // pred_fallthru
      _
    // Predicated region
    $region26: #{tpu_custom_call.1} parent=1 // pred_check
      _
    $region27: #{tpu_custom_call.1} parent=1 // pred_check_branch
      %123 = sbr.rel (0) target = $region29
    $region28: #{tpu_custom_call.1} parent=1 // pred_region
      %124 = dma.done [#allocation4], 128
    $region29: #{tpu_custom_call.1} parent=1 // pred_fallthru
      _
    %125 = vsyncpa [#allocation3], 1
    %126 = vsyncpa [#allocation6], 1
    %127 = vsyncpa [#allocation4], 1

</llo_original>
